<compile_context>
chip_gen: v7x
topology: tpu7x:2x2x1
jax: 0.10.0
libtpu: 0.0.40
codegen_flags: <defaults>
</compile_context>

<pallas_src>
import functools

import jax
import jax.numpy as jnp
from jax import lax
from jax.experimental import pallas as pl
from jax.experimental.pallas import tpu as pltpu

_LANES = 128
_INT32_MIN = -(2 ** 31)
_SENTINEL = 2 ** 31 - 1  # > key(+inf) = 0x7F800000, never produced by a real value


def _selector_kernel(x_ref, out_ref, key_ref, *, thres, num_corr, n_valid):
    """One grid step: pick the num_corr smallest thresholded entries per batch row.

    x_ref:   (Bb, R, 128)  input dtype — lane-dense flattened confidence map
    out_ref: (Bb, 1, Kpad) int32       — picked flat indices in columns [0, num_corr)
    key_ref: (Bb, R, 128)  int32 VMEM scratch — sortable keys, mutated per pick
    """
    Bb, R, L = x_ref.shape

    # Threshold in f32 (cast happens after the narrow DMA).
    x = x_ref[...].astype(jnp.float32)
    x = jnp.where(x > jnp.float32(thres), x, jnp.float32(0.0))

    # Monotone float32 -> sortable int32 key (order preserving; +/-0 -> 0).
    b = pltpu.bitcast(x, jnp.int32)
    key = jnp.where(b >= 0, b, jnp.int32(_INT32_MIN) - b)

    # Flat index of every lane (row-major over the original S*T map), materialized
    # once at full (Bb, R, 128) so nothing re-broadcasts inside the pick loop.
    row_ids = lax.broadcasted_iota(jnp.int32, (Bb, R, L), 1)
    col_ids = lax.broadcasted_iota(jnp.int32, (Bb, R, L), 2)
    flat = row_ids * L + col_ids

    # Lane padding (flat >= S*T) must never be selected.
    key_ref[...] = jnp.where(flat < n_valid, key, jnp.int32(_SENTINEL))
    out_ref[...] = jnp.zeros_like(out_ref)

    big_idx = jnp.int32(R * L)  # > any valid flat index
    sentinel = jnp.int32(_SENTINEL)

    def _min_all(a):  # reduce the trailing (R, 128) tile per batch row -> (Bb,1,1)
        m = jnp.min(a, axis=2, keepdims=True)
        if a.shape[1] > 1:
            m = jnp.min(m, axis=1, keepdims=True)
        return m

    def pick(j):
        k = key_ref[...]
        m = _min_all(k)                             # smallest key per batch
        cand = jnp.where(k == m, flat, big_idx)     # tie-break: smallest flat index
        idx = _min_all(cand)                        # (Bb, 1, 1) picked flat index
        out_ref[:, :, pl.ds(j, 1)] = idx
        key_ref[...] = jnp.where(flat == idx, sentinel, k)   # exclude the pick

    if num_corr <= 16:
        for j in range(num_corr):                   # small K: unrolled (test path)
            pick(j)
    else:
        pl.loop(0, num_corr)(pick)                  # large K: rolled; refs carry state


def node_correspondence_selector(confidence_map, num_corr, thres=0.1,
                                 vmem_budget_bytes=8 * 1024 * 1024):
    """Pallas implementation of NodeCorrespondenceSelector.forward."""
    B, S, T = confidence_map.shape
    n = S * T
    num_corr = int(num_corr)
    if num_corr > n:
        raise ValueError("num_corr > num_src*num_tgt (torch.topk would also fail)")
    if n >= 2 ** 31:
        raise ValueError("num_src*num_tgt must fit in int32 flat indices")

    R = pl.cdiv(n, _LANES)
    L = R * _LANES
    Kpad = pl.cdiv(num_corr, _LANES) * _LANES

    # Lane-dense (B, R, 128) slab; pad value is irrelevant (masked by index in-kernel).
    xf = confidence_map.reshape(B, n)
    if L != n:
        xf = jnp.pad(xf, ((0, 0), (0, L - n)))
    x = xf.reshape(B, R, _LANES)

    # Batches per grid step from a conservative VMEM budget (safe on v5e/v6e/v7x):
    # 2x double-buffered input block + int32 key scratch + f32/iota temporaries + output.
    itemsize = jnp.dtype(confidence_map.dtype).itemsize
    per_b = R * _LANES * (2 * itemsize + 3 * 4) + 2 * Kpad * 4
    Bb = int(max(1, min(B, vmem_budget_bytes // max(per_b, 1))))
    Bp = pl.cdiv(B, Bb) * Bb
    if Bp != B:
        x = jnp.pad(x, ((0, Bp - B), (0, 0), (0, 0)))  # padded batches are sliced off

    kernel = functools.partial(_selector_kernel, thres=float(thres),
                               num_corr=num_corr, n_valid=n)

    out = pl.pallas_call(
        kernel,
        out_shape=jax.ShapeDtypeStruct((Bp, 1, Kpad), jnp.int32),
        grid=(Bp // Bb,),
        in_specs=[pl.BlockSpec((Bb, R, _LANES), lambda i: (i, 0, 0))],
        out_specs=pl.BlockSpec((Bb, 1, Kpad), lambda i: (i, 0, 0)),
        scratch_shapes=[pltpu.VMEM((Bb, R, _LANES), jnp.int32)],
        compiler_params=pltpu.CompilerParams(
            dimension_semantics=("parallel",),
            vmem_limit_bytes=32 * 1024 * 1024),
    )(x)

    # Glue in the wrapper: split flat index into (src, tgt) and stack -> (B, num_corr, 2).
    flat_idx = out[:B, 0, :num_corr]
    return jnp.stack([flat_idx // T, flat_idx % T], axis=-1).astype(jnp.int32)


def _reference(confidence_map, num_corr, thres=0.1):
    """Pure-JAX reference with the same tie-breaking (stable ascending sort)."""
    B, S, T = confidence_map.shape
    x = jnp.where(confidence_map > thres, confidence_map, 0.0).reshape(B, -1)
    flat = jnp.argsort(x, axis=-1, stable=True)[:, :num_corr].astype(jnp.int32)
    return jnp.stack([flat // T, flat % T], axis=-1)


if __name__ == "__main__":
    key = jax.random.PRNGKey(0)
    B, num_src, num_tgt = 2, 8, 16
    num_corr, thres = 6, 0.1

    confidence_map = jax.random.uniform(key, (B, num_src, num_tgt), dtype=jnp.float32)

    out = node_correspondence_selector(confidence_map, num_corr, thres)
    out = jax.block_until_ready(out)

    ref = _reference(confidence_map, num_corr, thres)
    assert out.shape == (B, num_corr, 2), out.shape
    assert jnp.array_equal(out, ref), (out, ref)

    print("KERNEL_OK")
</pallas_src>

<mosaic_0001>
module attributes {stable_mosaic.version = 11 : i64} {
  func.func @_selector_kernel(%arg0: i32, %arg1: memref<2x1x128xf32, #tpu.memory_space<vmem>>, %arg2: memref<2x1x128xi32, #tpu.memory_space<vmem>>, %arg3: memref<2x1x128xi32, #tpu.memory_space<vmem>>) attributes {dimension_semantics = [#tpu.dimension_semantics<parallel>], iteration_bounds = array<i64: 1>, scalar_prefetch = 0 : i64, scratch_operands = 1 : i64, tpu.core_type = #tpu.core_type<tc>, window_params = [{transform_indices = @transform_0, window_bounds = array<i64: 2, 1, 128>}, {transform_indices = @transform_1, window_bounds = array<i64: 2, 1, 128>}]} {
    %c0 = arith.constant 0 : index
    %c0_0 = arith.constant 0 : index
    %c0_1 = arith.constant 0 : index
    %0 = vector.load %arg1[%c0, %c0_0, %c0_1] : memref<2x1x128xf32, #tpu.memory_space<vmem>>, vector<2x1x128xf32>
    %cst = arith.constant 1.000000e-01 : f32
    %1 = vector.broadcast %cst : f32 to vector<2x1x128xf32>
    %2 = arith.cmpf ogt, %0, %1 : vector<2x1x128xf32>
    %cst_2 = arith.constant 0.000000e+00 : f32
    %3 = vector.broadcast %cst_2 : f32 to vector<2x1x128xf32>
    %4 = arith.select %2, %0, %3 : vector<2x1x128xi1>, vector<2x1x128xf32>
    %5 = tpu.bitcast %4 : vector<2x1x128xf32> -> vector<2x1x128xi32>
    %c0_i32 = arith.constant 0 : i32
    %6 = vector.broadcast %c0_i32 : i32 to vector<2x1x128xi32>
    %7 = arith.cmpi sge, %5, %6 : vector<2x1x128xi32>
    %c-2147483648_i32 = arith.constant -2147483648 : i32
    %8 = vector.broadcast %c-2147483648_i32 : i32 to vector<2x1x128xi32>
    %9 = arith.subi %8, %5 : vector<2x1x128xi32>
    %10 = arith.select %7, %5, %9 : vector<2x1x128xi1>, vector<2x1x128xi32>
    %11 = tpu.iota {dimensions = array<i32: 1>} : vector<2x1x128xi32>
    %12 = tpu.iota {dimensions = array<i32: 2>} : vector<2x1x128xi32>
    %c128_i32 = arith.constant 128 : i32
    %13 = vector.broadcast %c128_i32 : i32 to vector<2x1x128xi32>
    %14 = arith.muli %11, %13 : vector<2x1x128xi32>
    %15 = arith.addi %14, %12 : vector<2x1x128xi32>
    %c128_i32_3 = arith.constant 128 : i32
    %16 = vector.broadcast %c128_i32_3 : i32 to vector<2x1x128xi32>
    %17 = arith.cmpi slt, %15, %16 : vector<2x1x128xi32>
    %c2147483647_i32 = arith.constant 2147483647 : i32
    %18 = vector.broadcast %c2147483647_i32 : i32 to vector<2x1x128xi32>
    %19 = arith.select %17, %10, %18 : vector<2x1x128xi1>, vector<2x1x128xi32>
    %c0_4 = arith.constant 0 : index
    %c0_5 = arith.constant 0 : index
    %c0_6 = arith.constant 0 : index
    %20 = vector.load %arg3[%c0_4, %c0_5, %c0_6] : memref<2x1x128xi32, #tpu.memory_space<vmem>>, vector<2x1x128xi32>
    tpu.vector_store %arg3[%c0_4, %c0_5, %c0_6], %19 {strides = array<i32>} : memref<2x1x128xi32, #tpu.memory_space<vmem>>, vector<2x1x128xi32>,
    %c0_i32_7 = arith.constant 0 : i32
    %21 = vector.broadcast %c0_i32_7 : i32 to vector<2x1x128xi32>
    %c0_8 = arith.constant 0 : index
    %c0_9 = arith.constant 0 : index
    %c0_10 = arith.constant 0 : index
    %22 = vector.load %arg2[%c0_8, %c0_9, %c0_10] : memref<2x1x128xi32, #tpu.memory_space<vmem>>, vector<2x1x128xi32>
    tpu.vector_store %arg2[%c0_8, %c0_9, %c0_10], %21 {strides = array<i32>} : memref<2x1x128xi32, #tpu.memory_space<vmem>>, vector<2x1x128xi32>,
    %c0_11 = arith.constant 0 : index
    %c0_12 = arith.constant 0 : index
    %c0_13 = arith.constant 0 : index
    %23 = vector.load %arg3[%c0_11, %c0_12, %c0_13] : memref<2x1x128xi32, #tpu.memory_space<vmem>>, vector<2x1x128xi32>
    %cst_14 = arith.constant dense<2147483647> : vector<2x1xi32>
    %24 = vector.multi_reduction <minsi>, %23, %cst_14 [2] : vector<2x1x128xi32> to vector<2x1xi32>
    %25 = vector.shape_cast %24 : vector<2x1xi32> to vector<2x1x1xi32>
    %26 = vector.broadcast %25 : vector<2x1x1xi32> to vector<2x1x128xi32>
    %27 = arith.cmpi eq, %23, %26 : vector<2x1x128xi32>
    %c128_i32_15 = arith.constant 128 : i32
    %28 = vector.broadcast %c128_i32_15 : i32 to vector<2x1x128xi32>
    %29 = arith.select %27, %15, %28 : vector<2x1x128xi1>, vector<2x1x128xi32>
    %cst_16 = arith.constant dense<2147483647> : vector<2x1xi32>
    %30 = vector.multi_reduction <minsi>, %29, %cst_16 [2] : vector<2x1x128xi32> to vector<2x1xi32>
    %31 = vector.shape_cast %30 : vector<2x1xi32> to vector<2x1x1xi32>
    %c0_17 = arith.constant 0 : index
    %c0_18 = arith.constant 0 : index
    %c0_19 = arith.constant 0 : index
    %32 = vector.load %arg2[%c0_17, %c0_18, %c0_19] : memref<2x1x128xi32, #tpu.memory_space<vmem>>, vector<2x1x1xi32>
    tpu.vector_store %arg2[%c0_17, %c0_18, %c0_19], %31 {strides = array<i32>} : memref<2x1x128xi32, #tpu.memory_space<vmem>>, vector<2x1x1xi32>,
    %33 = vector.broadcast %31 : vector<2x1x1xi32> to vector<2x1x128xi32>
    %34 = arith.cmpi eq, %15, %33 : vector<2x1x128xi32>
    %c2147483647_i32_20 = arith.constant 2147483647 : i32
    %35 = vector.broadcast %c2147483647_i32_20 : i32 to vector<2x1x128xi32>
    %36 = arith.select %34, %35, %23 : vector<2x1x128xi1>, vector<2x1x128xi32>
    %c0_21 = arith.constant 0 : index
    %c0_22 = arith.constant 0 : index
    %c0_23 = arith.constant 0 : index
    %37 = vector.load %arg3[%c0_21, %c0_22, %c0_23] : memref<2x1x128xi32, #tpu.memory_space<vmem>>, vector<2x1x128xi32>
    tpu.vector_store %arg3[%c0_21, %c0_22, %c0_23], %36 {strides = array<i32>} : memref<2x1x128xi32, #tpu.memory_space<vmem>>, vector<2x1x128xi32>,
    %c0_24 = arith.constant 0 : index
    %c0_25 = arith.constant 0 : index
    %c0_26 = arith.constant 0 : index
    %38 = vector.load %arg3[%c0_24, %c0_25, %c0_26] : memref<2x1x128xi32, #tpu.memory_space<vmem>>, vector<2x1x128xi32>
    %cst_27 = arith.constant dense<2147483647> : vector<2x1xi32>
    %39 = vector.multi_reduction <minsi>, %38, %cst_27 [2] : vector<2x1x128xi32> to vector<2x1xi32>
    %40 = vector.shape_cast %39 : vector<2x1xi32> to vector<2x1x1xi32>
    %41 = vector.broadcast %40 : vector<2x1x1xi32> to vector<2x1x128xi32>
    %42 = arith.cmpi eq, %38, %41 : vector<2x1x128xi32>
    %c128_i32_28 = arith.constant 128 : i32
    %43 = vector.broadcast %c128_i32_28 : i32 to vector<2x1x128xi32>
    %44 = arith.select %42, %15, %43 : vector<2x1x128xi1>, vector<2x1x128xi32>
    %cst_29 = arith.constant dense<2147483647> : vector<2x1xi32>
    %45 = vector.multi_reduction <minsi>, %44, %cst_29 [2] : vector<2x1x128xi32> to vector<2x1xi32>
    %46 = vector.shape_cast %45 : vector<2x1xi32> to vector<2x1x1xi32>
    %c0_30 = arith.constant 0 : index
    %c0_31 = arith.constant 0 : index
    %c1 = arith.constant 1 : index
    %47 = vector.load %arg2[%c0_30, %c0_31, %c1] : memref<2x1x128xi32, #tpu.memory_space<vmem>>, vector<2x1x1xi32>
    tpu.vector_store %arg2[%c0_30, %c0_31, %c1], %46 {strides = array<i32>} : memref<2x1x128xi32, #tpu.memory_space<vmem>>, vector<2x1x1xi32>,
    %48 = vector.broadcast %46 : vector<2x1x1xi32> to vector<2x1x128xi32>
    %49 = arith.cmpi eq, %15, %48 : vector<2x1x128xi32>
    %c2147483647_i32_32 = arith.constant 2147483647 : i32
    %50 = vector.broadcast %c2147483647_i32_32 : i32 to vector<2x1x128xi32>
    %51 = arith.select %49, %50, %38 : vector<2x1x128xi1>, vector<2x1x128xi32>
    %c0_33 = arith.constant 0 : index
    %c0_34 = arith.constant 0 : index
    %c0_35 = arith.constant 0 : index
    %52 = vector.load %arg3[%c0_33, %c0_34, %c0_35] : memref<2x1x128xi32, #tpu.memory_space<vmem>>, vector<2x1x128xi32>
    tpu.vector_store %arg3[%c0_33, %c0_34, %c0_35], %51 {strides = array<i32>} : memref<2x1x128xi32, #tpu.memory_space<vmem>>, vector<2x1x128xi32>,
    %c0_36 = arith.constant 0 : index
    %c0_37 = arith.constant 0 : index
    %c0_38 = arith.constant 0 : index
    %53 = vector.load %arg3[%c0_36, %c0_37, %c0_38] : memref<2x1x128xi32, #tpu.memory_space<vmem>>, vector<2x1x128xi32>
    %cst_39 = arith.constant dense<2147483647> : vector<2x1xi32>
    %54 = vector.multi_reduction <minsi>, %53, %cst_39 [2] : vector<2x1x128xi32> to vector<2x1xi32>
    %55 = vector.shape_cast %54 : vector<2x1xi32> to vector<2x1x1xi32>
    %56 = vector.broadcast %55 : vector<2x1x1xi32> to vector<2x1x128xi32>
    %57 = arith.cmpi eq, %53, %56 : vector<2x1x128xi32>
    %c128_i32_40 = arith.constant 128 : i32
    %58 = vector.broadcast %c128_i32_40 : i32 to vector<2x1x128xi32>
    %59 = arith.select %57, %15, %58 : vector<2x1x128xi1>, vector<2x1x128xi32>
    %cst_41 = arith.constant dense<2147483647> : vector<2x1xi32>
    %60 = vector.multi_reduction <minsi>, %59, %cst_41 [2] : vector<2x1x128xi32> to vector<2x1xi32>
    %61 = vector.shape_cast %60 : vector<2x1xi32> to vector<2x1x1xi32>
    %c0_42 = arith.constant 0 : index
    %c0_43 = arith.constant 0 : index
    %c2 = arith.constant 2 : index
    %62 = vector.load %arg2[%c0_42, %c0_43, %c2] : memref<2x1x128xi32, #tpu.memory_space<vmem>>, vector<2x1x1xi32>
    tpu.vector_store %arg2[%c0_42, %c0_43, %c2], %61 {strides = array<i32>} : memref<2x1x128xi32, #tpu.memory_space<vmem>>, vector<2x1x1xi32>,
    %63 = vector.broadcast %61 : vector<2x1x1xi32> to vector<2x1x128xi32>
    %64 = arith.cmpi eq, %15, %63 : vector<2x1x128xi32>
    %c2147483647_i32_44 = arith.constant 2147483647 : i32
    %65 = vector.broadcast %c2147483647_i32_44 : i32 to vector<2x1x128xi32>
    %66 = arith.select %64, %65, %53 : vector<2x1x128xi1>, vector<2x1x128xi32>
    %c0_45 = arith.constant 0 : index
    %c0_46 = arith.constant 0 : index
    %c0_47 = arith.constant 0 : index
    %67 = vector.load %arg3[%c0_45, %c0_46, %c0_47] : memref<2x1x128xi32, #tpu.memory_space<vmem>>, vector<2x1x128xi32>
    tpu.vector_store %arg3[%c0_45, %c0_46, %c0_47], %66 {strides = array<i32>} : memref<2x1x128xi32, #tpu.memory_space<vmem>>, vector<2x1x128xi32>,
    %c0_48 = arith.constant 0 : index
    %c0_49 = arith.constant 0 : index
    %c0_50 = arith.constant 0 : index
    %68 = vector.load %arg3[%c0_48, %c0_49, %c0_50] : memref<2x1x128xi32, #tpu.memory_space<vmem>>, vector<2x1x128xi32>
    %cst_51 = arith.constant dense<2147483647> : vector<2x1xi32>
    %69 = vector.multi_reduction <minsi>, %68, %cst_51 [2] : vector<2x1x128xi32> to vector<2x1xi32>
    %70 = vector.shape_cast %69 : vector<2x1xi32> to vector<2x1x1xi32>
    %71 = vector.broadcast %70 : vector<2x1x1xi32> to vector<2x1x128xi32>
    %72 = arith.cmpi eq, %68, %71 : vector<2x1x128xi32>
    %c128_i32_52 = arith.constant 128 : i32
    %73 = vector.broadcast %c128_i32_52 : i32 to vector<2x1x128xi32>
    %74 = arith.select %72, %15, %73 : vector<2x1x128xi1>, vector<2x1x128xi32>
    %cst_53 = arith.constant dense<2147483647> : vector<2x1xi32>
    %75 = vector.multi_reduction <minsi>, %74, %cst_53 [2] : vector<2x1x128xi32> to vector<2x1xi32>
    %76 = vector.shape_cast %75 : vector<2x1xi32> to vector<2x1x1xi32>
    %c0_54 = arith.constant 0 : index
    %c0_55 = arith.constant 0 : index
    %c3 = arith.constant 3 : index
    %77 = vector.load %arg2[%c0_54, %c0_55, %c3] : memref<2x1x128xi32, #tpu.memory_space<vmem>>, vector<2x1x1xi32>
    tpu.vector_store %arg2[%c0_54, %c0_55, %c3], %76 {strides = array<i32>} : memref<2x1x128xi32, #tpu.memory_space<vmem>>, vector<2x1x1xi32>,
    %78 = vector.broadcast %76 : vector<2x1x1xi32> to vector<2x1x128xi32>
    %79 = arith.cmpi eq, %15, %78 : vector<2x1x128xi32>
    %c2147483647_i32_56 = arith.constant 2147483647 : i32
    %80 = vector.broadcast %c2147483647_i32_56 : i32 to vector<2x1x128xi32>
    %81 = arith.select %79, %80, %68 : vector<2x1x128xi1>, vector<2x1x128xi32>
    %c0_57 = arith.constant 0 : index
    %c0_58 = arith.constant 0 : index
    %c0_59 = arith.constant 0 : index
    %82 = vector.load %arg3[%c0_57, %c0_58, %c0_59] : memref<2x1x128xi32, #tpu.memory_space<vmem>>, vector<2x1x128xi32>
    tpu.vector_store %arg3[%c0_57, %c0_58, %c0_59], %81 {strides = array<i32>} : memref<2x1x128xi32, #tpu.memory_space<vmem>>, vector<2x1x128xi32>,
    %c0_60 = arith.constant 0 : index
    %c0_61 = arith.constant 0 : index
    %c0_62 = arith.constant 0 : index
    %83 = vector.load %arg3[%c0_60, %c0_61, %c0_62] : memref<2x1x128xi32, #tpu.memory_space<vmem>>, vector<2x1x128xi32>
    %cst_63 = arith.constant dense<2147483647> : vector<2x1xi32>
    %84 = vector.multi_reduction <minsi>, %83, %cst_63 [2] : vector<2x1x128xi32> to vector<2x1xi32>
    %85 = vector.shape_cast %84 : vector<2x1xi32> to vector<2x1x1xi32>
    %86 = vector.broadcast %85 : vector<2x1x1xi32> to vector<2x1x128xi32>
    %87 = arith.cmpi eq, %83, %86 : vector<2x1x128xi32>
    %c128_i32_64 = arith.constant 128 : i32
    %88 = vector.broadcast %c128_i32_64 : i32 to vector<2x1x128xi32>
    %89 = arith.select %87, %15, %88 : vector<2x1x128xi1>, vector<2x1x128xi32>
    %cst_65 = arith.constant dense<2147483647> : vector<2x1xi32>
    %90 = vector.multi_reduction <minsi>, %89, %cst_65 [2] : vector<2x1x128xi32> to vector<2x1xi32>
    %91 = vector.shape_cast %90 : vector<2x1xi32> to vector<2x1x1xi32>
    %c0_66 = arith.constant 0 : index
    %c0_67 = arith.constant 0 : index
    %c4 = arith.constant 4 : index
    %92 = vector.load %arg2[%c0_66, %c0_67, %c4] : memref<2x1x128xi32, #tpu.memory_space<vmem>>, vector<2x1x1xi32>
    tpu.vector_store %arg2[%c0_66, %c0_67, %c4], %91 {strides = array<i32>} : memref<2x1x128xi32, #tpu.memory_space<vmem>>, vector<2x1x1xi32>,
    %93 = vector.broadcast %91 : vector<2x1x1xi32> to vector<2x1x128xi32>
    %94 = arith.cmpi eq, %15, %93 : vector<2x1x128xi32>
    %c2147483647_i32_68 = arith.constant 2147483647 : i32
    %95 = vector.broadcast %c2147483647_i32_68 : i32 to vector<2x1x128xi32>
    %96 = arith.select %94, %95, %83 : vector<2x1x128xi1>, vector<2x1x128xi32>
    %c0_69 = arith.constant 0 : index
    %c0_70 = arith.constant 0 : index
    %c0_71 = arith.constant 0 : index
    %97 = vector.load %arg3[%c0_69, %c0_70, %c0_71] : memref<2x1x128xi32, #tpu.memory_space<vmem>>, vector<2x1x128xi32>
    tpu.vector_store %arg3[%c0_69, %c0_70, %c0_71], %96 {strides = array<i32>} : memref<2x1x128xi32, #tpu.memory_space<vmem>>, vector<2x1x128xi32>,
    %c0_72 = arith.constant 0 : index
    %c0_73 = arith.constant 0 : index
    %c0_74 = arith.constant 0 : index
    %98 = vector.load %arg3[%c0_72, %c0_73, %c0_74] : memref<2x1x128xi32, #tpu.memory_space<vmem>>, vector<2x1x128xi32>
    %cst_75 = arith.constant dense<2147483647> : vector<2x1xi32>
    %99 = vector.multi_reduction <minsi>, %98, %cst_75 [2] : vector<2x1x128xi32> to vector<2x1xi32>
    %100 = vector.shape_cast %99 : vector<2x1xi32> to vector<2x1x1xi32>
    %101 = vector.broadcast %100 : vector<2x1x1xi32> to vector<2x1x128xi32>
    %102 = arith.cmpi eq, %98, %101 : vector<2x1x128xi32>
    %c128_i32_76 = arith.constant 128 : i32
    %103 = vector.broadcast %c128_i32_76 : i32 to vector<2x1x128xi32>
    %104 = arith.select %102, %15, %103 : vector<2x1x128xi1>, vector<2x1x128xi32>
    %cst_77 = arith.constant dense<2147483647> : vector<2x1xi32>
    %105 = vector.multi_reduction <minsi>, %104, %cst_77 [2] : vector<2x1x128xi32> to vector<2x1xi32>
    %106 = vector.shape_cast %105 : vector<2x1xi32> to vector<2x1x1xi32>
    %c0_78 = arith.constant 0 : index
    %c0_79 = arith.constant 0 : index
    %c5 = arith.constant 5 : index
    %107 = vector.load %arg2[%c0_78, %c0_79, %c5] : memref<2x1x128xi32, #tpu.memory_space<vmem>>, vector<2x1x1xi32>
    tpu.vector_store %arg2[%c0_78, %c0_79, %c5], %106 {strides = array<i32>} : memref<2x1x128xi32, #tpu.memory_space<vmem>>, vector<2x1x1xi32>,
    %108 = vector.broadcast %106 : vector<2x1x1xi32> to vector<2x1x128xi32>
    %109 = arith.cmpi eq, %15, %108 : vector<2x1x128xi32>
    %c2147483647_i32_80 = arith.constant 2147483647 : i32
    %110 = vector.broadcast %c2147483647_i32_80 : i32 to vector<2x1x128xi32>
    %111 = arith.select %109, %110, %98 : vector<2x1x128xi1>, vector<2x1x128xi32>
    %c0_81 = arith.constant 0 : index
    %c0_82 = arith.constant 0 : index
    %c0_83 = arith.constant 0 : index
    %112 = vector.load %arg3[%c0_81, %c0_82, %c0_83] : memref<2x1x128xi32, #tpu.memory_space<vmem>>, vector<2x1x128xi32>
    tpu.vector_store %arg3[%c0_81, %c0_82, %c0_83], %111 {strides = array<i32>} : memref<2x1x128xi32, #tpu.memory_space<vmem>>, vector<2x1x128xi32>,
    return
  }
  func.func @transform_0(%arg0: i32) -> (i32, i32, i32) {
    %c0_i32 = arith.constant 0 : i32
    %c0_i32_0 = arith.constant 0 : i32
    %c0_i32_1 = arith.constant 0 : i32
    return %arg0, %c0_i32, %c0_i32_0 : i32, i32, i32
  }
  func.func @transform_1(%arg0: i32) -> (i32, i32, i32) {
    %c0_i32 = arith.constant 0 : i32
    %c0_i32_0 = arith.constant 0 : i32
    %c0_i32_1 = arith.constant 0 : i32
    return %arg0, %c0_i32, %c0_i32_0 : i32, i32, i32
  }
}

</mosaic_0001>

<llo_original>
// kernel: tpu_custom_call.1
$region0: #{tpu_custom_call.1}
  #allocation0 [shape = 'u32[]', space=smem, size = 0x4, offset = 0x4, fixed_abs, tag = 'smem constant byte address 0x4 - core index']
  #allocation1 [shape = 'u32[144,128]{1,0:T(1,128)}', space=vmem, size = 0x12000, scoped, tag = 'internal scratch']
  #allocation2 [shape = 's32[2,1,128]{2,1,0:T(1,128)}', space=vmem, size = 0x400, scoped, tag = 'scratch operand']
  %s0 = inlined_call_operand.hbm [shape: f32[2,1,128], index: 0, kind: input, shape index: {}]
  %s1 = inlined_call_operand.hbm [shape: s32[2,1,128], index: 1, kind: output, shape index: {}]
  %s2 = sld [smem:[#allocation0]]
  $region18: #{tpu_custom_call.1} parent=0
    _
  %s4 = ssub.s32 1, %s2
  %s5 = scalar_select 0, %s4, %s2
  $region1: #{tpu_custom_call.1} parent=0
    #allocation3 [shape = 'u8[1024]{0}', space=vmem, size = 0x400, scoped, tag = 'input window, operand 0, single buffered']
    #allocation4 [shape = 's32[1]{0}', space=sflag, size = 0x4, scoped, tag = 'scoped memory for tpu_custom_call.1']
    #allocation5 [shape = 's32[1]{0}', space=sflag, size = 0x4, scoped, tag = 'scoped memory for tpu_custom_call.1']
    #allocation6 [shape = 'u8[1024]{0}', space=vmem, size = 0x400, scoped, tag = 'output window, operand 0, single buffered']
    %6 = vsyncpa [#allocation4], 0
    %7 = vsyncpa [#allocation5], 0
    // Predicated region
    $region2: #{tpu_custom_call.1} parent=1 // pred_check
      _
    $region3: #{tpu_custom_call.1} parent=1 // pred_check_branch
      %9 = sbr.rel (0) target = $region5
    $region4: #{tpu_custom_call.1} parent=1 // pred_region
      %s11 = ssub.s32 32, 32
      %12 = vsyncadd [#allocation4], %s11
      %s13 = sshll.u32 [#allocation3], 4
      %s14 = int_to_ptr.vmem [resolvable:$true] %s13
      %19 = dma.hbm_to_vmem [thread:$0]  %s0, 32, %s14, [#allocation4], 16, 16, 1
    $region5: #{tpu_custom_call.1} parent=1 // pred_fallthru
      _
    // Predicated region
    $region6: #{tpu_custom_call.1} parent=1 // pred_check
      _
    $region7: #{tpu_custom_call.1} parent=1 // pred_check_branch
      %21 = sbr.rel (0) target = $region9
    $region8: #{tpu_custom_call.1} parent=1 // pred_region
      %22 = dma.done [#allocation4], 32
    $region9: #{tpu_custom_call.1} parent=1 // pred_fallthru
      _
    %v23 = vld [vmem:[#allocation3] sm:$0x1]
    %v24 = vld [vmem:[#allocation3 + $0x1] sm:$0x1]
    %vm25 = vcmp.gt.f32.partialorder %v23, 0.1
    %vm26 = vcmp.gt.f32.partialorder %v24, 0.1
    %v27 = vsel %vm25, %v23, 0.0
    %v28 = vsel %vm26, %v24, 0.0
    %vm31 = vcmp.ge.s32.totalorder %v27, 0
    %vm32 = vcmp.ge.s32.totalorder %v28, 0
    %v33 = vsub.s32 2147483648, %v27
    %v34 = vsub.s32 2147483648, %v28
    %v35 = vsel %vm31, %v27, %v33
    %v36 = vsel %vm32, %v28, %v34
    %v37 = vlaneseq
    %v38 = vshrl.u32 %v37, 7
    %v39 = vlaneseq
    %v40 = vand.u32 %v39, 127
    %v41 = vmul.u32 %v38, 128
    %v42 = vadd.s32 %v41, %v40
    %vm43 = vcmp.lt.s32.totalorder %v42, 128
    %v44 = vsel %vm43, %v35, 2147483647
    %v45 = vsel %vm43, %v36, 2147483647
    %46 = vst [vmem:[#allocation2] sm:$0x1] %v44
    %47 = vst [vmem:[#allocation2 + $0x1] sm:$0x1] %v45
    %48 = vst [vmem:[#allocation6] sm:$0x1] 0
    %49 = vst [vmem:[#allocation6 + $0x1] sm:$0x1] 0
    %v50 = vld [vmem:[#allocation2] sm:$0x1]
    %v51 = vld [vmem:[#allocation2 + $0x1] sm:$0x1]
    %vm52 = vcmask 1040384
    %v53 = vsel %vm52, %v50, 2147483647
    %v54 = vand.u32 %v53, 65535
    %v55 = vshra.s32 %v53, 16
    %v56 = vcvt.s32.f32 %v54
    %v57 = vcvt.s32.f32 %v55
    %58 = vmin.xlane.f32.xlu0 %v57
    %v59 = vpop.xlane.xlu0 %58
    %vm60 = vcmp.eq.f32.partialorder %v57, %v59
    %v61 = vsel %vm60, %v56, inf
    %62 = vmin.xlane.f32.xlu0 %v61
    %v63 = vpop.xlane.xlu0 %62
    %v64 = vcvt.f32.s32 %v63
    %v65 = vcvt.f32.s32 %v59
    %v66 = vshll.u32 %v65, 16
    %v67 = vadd.s32 %v66, %v64
    %v68 = vsel %vm52, %v51, 2147483647
    %v69 = vand.u32 %v68, 65535
    %v70 = vshra.s32 %v68, 16
    %v71 = vcvt.s32.f32 %v69
    %v72 = vcvt.s32.f32 %v70
    %73 = vmin.xlane.f32.xlu0 %v72
    %v74 = vpop.xlane.xlu0 %73
    %vm75 = vcmp.eq.f32.partialorder %v72, %v74
    %v76 = vsel %vm75, %v71, inf
    %77 = vmin.xlane.f32.xlu0 %v76
    %v78 = vpop.xlane.xlu0 %77
    %v79 = vcvt.f32.s32 %v78
    %v80 = vcvt.f32.s32 %v74
    %v81 = vshll.u32 %v80, 16
    %v82 = vadd.s32 %v81, %v79
    %vm83 = vcmp.eq.s32.totalorder %v50, %v67
    %vm84 = vcmp.eq.s32.totalorder %v51, %v82
    %v85 = vsel %vm83, %v42, 128
    %v86 = vsel %vm84, %v42, 128
    %v87 = vsel %vm52, %v85, 2147483647
    %v88 = vand.u32 %v87, 65535
    %v89 = vshra.s32 %v87, 16
    %v90 = vcvt.s32.f32 %v88
    %v91 = vcvt.s32.f32 %v89
    %92 = vmin.xlane.f32.xlu0 %v91
    %v93 = vpop.xlane.xlu0 %92
    %vm94 = vcmp.eq.f32.partialorder %v91, %v93
    %v95 = vsel %vm94, %v90, inf
    %96 = vmin.xlane.f32.xlu0 %v95
    %v97 = vpop.xlane.xlu0 %96
    %v98 = vcvt.f32.s32 %v97
    %v99 = vcvt.f32.s32 %v93
    %v100 = vshll.u32 %v99, 16
    %v101 = vadd.s32 %v100, %v98
    %v102 = vsel %vm52, %v86, 2147483647
    %v103 = vand.u32 %v102, 65535
    %v104 = vshra.s32 %v102, 16
    %v105 = vcvt.s32.f32 %v103
    %v106 = vcvt.s32.f32 %v104
    %107 = vmin.xlane.f32.xlu0 %v106
    %v108 = vpop.xlane.xlu0 %107
    %vm109 = vcmp.eq.f32.partialorder %v106, %v108
    %v110 = vsel %vm109, %v105, inf
    %111 = vmin.xlane.f32.xlu0 %v110
    %v112 = vpop.xlane.xlu0 %111
    %v113 = vcvt.f32.s32 %v112
    %v114 = vcvt.f32.s32 %v108
    %v115 = vshll.u32 %v114, 16
    %v116 = vadd.s32 %v115, %v113
    %vm117 = vcmask 0
    %118 = vst.msk [vmem:[#allocation6] sm:$0x1] %vm117, %v101
    %119 = vst.msk [vmem:[#allocation6 + $0x1] sm:$0x1] %vm117, %v116
    %vm120 = vcmp.eq.s32.totalorder %v42, %v101
    %vm121 = vcmp.eq.s32.totalorder %v42, %v116
    %v122 = vsel %vm120, 2147483647, %v50
    %v123 = vsel %vm121, 2147483647, %v51
    %124 = vst [vmem:[#allocation2] sm:$0x1] %v122
    %125 = vst [vmem:[#allocation2 + $0x1] sm:$0x1] %v123
    %v126 = vld [vmem:[#allocation2] sm:$0x1]
    %v127 = vld [vmem:[#allocation2 + $0x1] sm:$0x1]
    %v128 = vsel %vm52, %v126, 2147483647
    %v129 = vand.u32 %v128, 65535
    %v130 = vshra.s32 %v128, 16
    %v131 = vcvt.s32.f32 %v129
    %v132 = vcvt.s32.f32 %v130
    %133 = vmin.xlane.f32.xlu0 %v132
    %v134 = vpop.xlane.xlu0 %133
    %vm135 = vcmp.eq.f32.partialorder %v132, %v134
    %v136 = vsel %vm135, %v131, inf
    %137 = vmin.xlane.f32.xlu0 %v136
    %v138 = vpop.xlane.xlu0 %137
    %v139 = vcvt.f32.s32 %v138
    %v140 = vcvt.f32.s32 %v134
    %v141 = vshll.u32 %v140, 16
    %v142 = vadd.s32 %v141, %v139
    %v143 = vsel %vm52, %v127, 2147483647
    %v144 = vand.u32 %v143, 65535
    %v145 = vshra.s32 %v143, 16
    %v146 = vcvt.s32.f32 %v144
    %v147 = vcvt.s32.f32 %v145
    %148 = vmin.xlane.f32.xlu0 %v147
    %v149 = vpop.xlane.xlu0 %148
    %vm150 = vcmp.eq.f32.partialorder %v147, %v149
    %v151 = vsel %vm150, %v146, inf
    %152 = vmin.xlane.f32.xlu0 %v151
    %v153 = vpop.xlane.xlu0 %152
    %v154 = vcvt.f32.s32 %v153
    %v155 = vcvt.f32.s32 %v149
    %v156 = vshll.u32 %v155, 16
    %v157 = vadd.s32 %v156, %v154
    %vm158 = vcmp.eq.s32.totalorder %v126, %v142
    %vm159 = vcmp.eq.s32.totalorder %v127, %v157
    %v160 = vsel %vm158, %v42, 128
    %v161 = vsel %vm159, %v42, 128
    %v162 = vsel %vm52, %v160, 2147483647
    %v163 = vand.u32 %v162, 65535
    %v164 = vshra.s32 %v162, 16
    %v165 = vcvt.s32.f32 %v163
    %v166 = vcvt.s32.f32 %v164
    %167 = vmin.xlane.f32.xlu0 %v166
    %v168 = vpop.xlane.xlu0 %167
    %vm169 = vcmp.eq.f32.partialorder %v166, %v168
    %v170 = vsel %vm169, %v165, inf
    %171 = vmin.xlane.f32.xlu0 %v170
    %v172 = vpop.xlane.xlu0 %171
    %v173 = vcvt.f32.s32 %v172
    %v174 = vcvt.f32.s32 %v168
    %v175 = vshll.u32 %v174, 16
    %v176 = vadd.s32 %v175, %v173
    %v177 = vsel %vm52, %v161, 2147483647
    %v178 = vand.u32 %v177, 65535
    %v179 = vshra.s32 %v177, 16
    %v180 = vcvt.s32.f32 %v178
    %v181 = vcvt.s32.f32 %v179
    %182 = vmin.xlane.f32.xlu0 %v181
    %v183 = vpop.xlane.xlu0 %182
    %vm184 = vcmp.eq.f32.partialorder %v181, %v183
    %v185 = vsel %vm184, %v180, inf
    %186 = vmin.xlane.f32.xlu0 %v185
    %v187 = vpop.xlane.xlu0 %186
    %v188 = vcvt.f32.s32 %v187
    %v189 = vcvt.f32.s32 %v183
    %v190 = vshll.u32 %v189, 16
    %v191 = vadd.s32 %v190, %v188
    %vm192 = vcmask 8200
    %193 = vst.msk [vmem:[#allocation6] sm:$0x1] %vm192, %v176
    %194 = vst.msk [vmem:[#allocation6 + $0x1] sm:$0x1] %vm192, %v191
    %vm195 = vcmp.eq.s32.totalorder %v42, %v176
    %vm196 = vcmp.eq.s32.totalorder %v42, %v191
    %v197 = vsel %vm195, 2147483647, %v126
    %v198 = vsel %vm196, 2147483647, %v127
    %199 = vst [vmem:[#allocation2] sm:$0x1] %v197
    %200 = vst [vmem:[#allocation2 + $0x1] sm:$0x1] %v198
    %v201 = vld [vmem:[#allocation2] sm:$0x1]
    %v202 = vld [vmem:[#allocation2 + $0x1] sm:$0x1]
    %v203 = vsel %vm52, %v201, 2147483647
    %v204 = vand.u32 %v203, 65535
    %v205 = vshra.s32 %v203, 16
    %v206 = vcvt.s32.f32 %v204
    %v207 = vcvt.s32.f32 %v205
    %208 = vmin.xlane.f32.xlu0 %v207
    %v209 = vpop.xlane.xlu0 %208
    %vm210 = vcmp.eq.f32.partialorder %v207, %v209
    %v211 = vsel %vm210, %v206, inf
    %212 = vmin.xlane.f32.xlu0 %v211
    %v213 = vpop.xlane.xlu0 %212
    %v214 = vcvt.f32.s32 %v213
    %v215 = vcvt.f32.s32 %v209
    %v216 = vshll.u32 %v215, 16
    %v217 = vadd.s32 %v216, %v214
    %v218 = vsel %vm52, %v202, 2147483647
    %v219 = vand.u32 %v218, 65535
    %v220 = vshra.s32 %v218, 16
    %v221 = vcvt.s32.f32 %v219
    %v222 = vcvt.s32.f32 %v220
    %223 = vmin.xlane.f32.xlu0 %v222
    %v224 = vpop.xlane.xlu0 %223
    %vm225 = vcmp.eq.f32.partialorder %v222, %v224
    %v226 = vsel %vm225, %v221, inf
    %227 = vmin.xlane.f32.xlu0 %v226
    %v228 = vpop.xlane.xlu0 %227
    %v229 = vcvt.f32.s32 %v228
    %v230 = vcvt.f32.s32 %v224
    %v231 = vshll.u32 %v230, 16
    %v232 = vadd.s32 %v231, %v229
    %vm233 = vcmp.eq.s32.totalorder %v201, %v217
    %vm234 = vcmp.eq.s32.totalorder %v202, %v232
    %v235 = vsel %vm233, %v42, 128
    %v236 = vsel %vm234, %v42, 128
    %v237 = vsel %vm52, %v235, 2147483647
    %v238 = vand.u32 %v237, 65535
    %v239 = vshra.s32 %v237, 16
    %v240 = vcvt.s32.f32 %v238
    %v241 = vcvt.s32.f32 %v239
    %242 = vmin.xlane.f32.xlu0 %v241
    %v243 = vpop.xlane.xlu0 %242
    %vm244 = vcmp.eq.f32.partialorder %v241, %v243
    %v245 = vsel %vm244, %v240, inf
    %246 = vmin.xlane.f32.xlu0 %v245
    %v247 = vpop.xlane.xlu0 %246
    %v248 = vcvt.f32.s32 %v247
    %v249 = vcvt.f32.s32 %v243
    %v250 = vshll.u32 %v249, 16
    %v251 = vadd.s32 %v250, %v248
    %v252 = vsel %vm52, %v236, 2147483647
    %v253 = vand.u32 %v252, 65535
    %v254 = vshra.s32 %v252, 16
    %v255 = vcvt.s32.f32 %v253
    %v256 = vcvt.s32.f32 %v254
    %257 = vmin.xlane.f32.xlu0 %v256
    %v258 = vpop.xlane.xlu0 %257
    %vm259 = vcmp.eq.f32.partialorder %v256, %v258
    %v260 = vsel %vm259, %v255, inf
    %261 = vmin.xlane.f32.xlu0 %v260
    %v262 = vpop.xlane.xlu0 %261
    %v263 = vcvt.f32.s32 %v262
    %v264 = vcvt.f32.s32 %v258
    %v265 = vshll.u32 %v264, 16
    %v266 = vadd.s32 %v265, %v263
    %vm267 = vcmask 16400
    %268 = vst.msk [vmem:[#allocation6] sm:$0x1] %vm267, %v251
    %269 = vst.msk [vmem:[#allocation6 + $0x1] sm:$0x1] %vm267, %v266
    %vm270 = vcmp.eq.s32.totalorder %v42, %v251
    %vm271 = vcmp.eq.s32.totalorder %v42, %v266
    %v272 = vsel %vm270, 2147483647, %v201
    %v273 = vsel %vm271, 2147483647, %v202
    %274 = vst [vmem:[#allocation2] sm:$0x1] %v272
    %275 = vst [vmem:[#allocation2 + $0x1] sm:$0x1] %v273
    %v276 = vld [vmem:[#allocation2] sm:$0x1]
    %v277 = vld [vmem:[#allocation2 + $0x1] sm:$0x1]
    %v278 = vsel %vm52, %v276, 2147483647
    %v279 = vand.u32 %v278, 65535
    %v280 = vshra.s32 %v278, 16
    %v281 = vcvt.s32.f32 %v279
    %v282 = vcvt.s32.f32 %v280
    %283 = vmin.xlane.f32.xlu0 %v282
    %v284 = vpop.xlane.xlu0 %283
    %vm285 = vcmp.eq.f32.partialorder %v282, %v284
    %v286 = vsel %vm285, %v281, inf
    %287 = vmin.xlane.f32.xlu0 %v286
    %v288 = vpop.xlane.xlu0 %287
    %v289 = vcvt.f32.s32 %v288
    %v290 = vcvt.f32.s32 %v284
    %v291 = vshll.u32 %v290, 16
    %v292 = vadd.s32 %v291, %v289
    %v293 = vsel %vm52, %v277, 2147483647
    %v294 = vand.u32 %v293, 65535
    %v295 = vshra.s32 %v293, 16
    %v296 = vcvt.s32.f32 %v294
    %v297 = vcvt.s32.f32 %v295
    %298 = vmin.xlane.f32.xlu0 %v297
    %v299 = vpop.xlane.xlu0 %298
    %vm300 = vcmp.eq.f32.partialorder %v297, %v299
    %v301 = vsel %vm300, %v296, inf
    %302 = vmin.xlane.f32.xlu0 %v301
    %v303 = vpop.xlane.xlu0 %302
    %v304 = vcvt.f32.s32 %v303
    %v305 = vcvt.f32.s32 %v299
    %v306 = vshll.u32 %v305, 16
    %v307 = vadd.s32 %v306, %v304
    %vm308 = vcmp.eq.s32.totalorder %v276, %v292
    %vm309 = vcmp.eq.s32.totalorder %v277, %v307
    %v310 = vsel %vm308, %v42, 128
    %v311 = vsel %vm309, %v42, 128
    %v312 = vsel %vm52, %v310, 2147483647
    %v313 = vand.u32 %v312, 65535
    %v314 = vshra.s32 %v312, 16
    %v315 = vcvt.s32.f32 %v313
    %v316 = vcvt.s32.f32 %v314
    %317 = vmin.xlane.f32.xlu0 %v316
    %v318 = vpop.xlane.xlu0 %317
    %vm319 = vcmp.eq.f32.partialorder %v316, %v318
    %v320 = vsel %vm319, %v315, inf
    %321 = vmin.xlane.f32.xlu0 %v320
    %v322 = vpop.xlane.xlu0 %321
    %v323 = vcvt.f32.s32 %v322
    %v324 = vcvt.f32.s32 %v318
    %v325 = vshll.u32 %v324, 16
    %v326 = vadd.s32 %v325, %v323
    %v327 = vsel %vm52, %v311, 2147483647
    %v328 = vand.u32 %v327, 65535
    %v329 = vshra.s32 %v327, 16
    %v330 = vcvt.s32.f32 %v328
    %v331 = vcvt.s32.f32 %v329
    %332 = vmin.xlane.f32.xlu0 %v331
    %v333 = vpop.xlane.xlu0 %332
    %vm334 = vcmp.eq.f32.partialorder %v331, %v333
    %v335 = vsel %vm334, %v330, inf
    %336 = vmin.xlane.f32.xlu0 %v335
    %v337 = vpop.xlane.xlu0 %336
    %v338 = vcvt.f32.s32 %v337
    %v339 = vcvt.f32.s32 %v333
    %v340 = vshll.u32 %v339, 16
    %v341 = vadd.s32 %v340, %v338
    %vm342 = vcmask 24600
    %343 = vst.msk [vmem:[#allocation6] sm:$0x1] %vm342, %v326
    %344 = vst.msk [vmem:[#allocation6 + $0x1] sm:$0x1] %vm342, %v341
    %vm345 = vcmp.eq.s32.totalorder %v42, %v326
    %vm346 = vcmp.eq.s32.totalorder %v42, %v341
    %v347 = vsel %vm345, 2147483647, %v276
    %v348 = vsel %vm346, 2147483647, %v277
    %349 = vst [vmem:[#allocation2] sm:$0x1] %v347
    %350 = vst [vmem:[#allocation2 + $0x1] sm:$0x1] %v348
    %v351 = vld [vmem:[#allocation2] sm:$0x1]
    %v352 = vld [vmem:[#allocation2 + $0x1] sm:$0x1]
    %v353 = vsel %vm52, %v351, 2147483647
    %v354 = vand.u32 %v353, 65535
    %v355 = vshra.s32 %v353, 16
    %v356 = vcvt.s32.f32 %v354
    %v357 = vcvt.s32.f32 %v355
    %358 = vmin.xlane.f32.xlu0 %v357
    %v359 = vpop.xlane.xlu0 %358
    %vm360 = vcmp.eq.f32.partialorder %v357, %v359
    %v361 = vsel %vm360, %v356, inf
    %362 = vmin.xlane.f32.xlu0 %v361
    %v363 = vpop.xlane.xlu0 %362
    %v364 = vcvt.f32.s32 %v363
    %v365 = vcvt.f32.s32 %v359
    %v366 = vshll.u32 %v365, 16
    %v367 = vadd.s32 %v366, %v364
    %v368 = vsel %vm52, %v352, 2147483647
    %v369 = vand.u32 %v368, 65535
    %v370 = vshra.s32 %v368, 16
    %v371 = vcvt.s32.f32 %v369
    %v372 = vcvt.s32.f32 %v370
    %373 = vmin.xlane.f32.xlu0 %v372
    %v374 = vpop.xlane.xlu0 %373
    %vm375 = vcmp.eq.f32.partialorder %v372, %v374
    %v376 = vsel %vm375, %v371, inf
    %377 = vmin.xlane.f32.xlu0 %v376
    %v378 = vpop.xlane.xlu0 %377
    %v379 = vcvt.f32.s32 %v378
    %v380 = vcvt.f32.s32 %v374
    %v381 = vshll.u32 %v380, 16
    %v382 = vadd.s32 %v381, %v379
    %vm383 = vcmp.eq.s32.totalorder %v351, %v367
    %vm384 = vcmp.eq.s32.totalorder %v352, %v382
    %v385 = vsel %vm383, %v42, 128
    %v386 = vsel %vm384, %v42, 128
    %v387 = vsel %vm52, %v385, 2147483647
    %v388 = vand.u32 %v387, 65535
    %v389 = vshra.s32 %v387, 16
    %v390 = vcvt.s32.f32 %v388
    %v391 = vcvt.s32.f32 %v389
    %392 = vmin.xlane.f32.xlu0 %v391
    %v393 = vpop.xlane.xlu0 %392
    %vm394 = vcmp.eq.f32.partialorder %v391, %v393
    %v395 = vsel %vm394, %v390, inf
    %396 = vmin.xlane.f32.xlu0 %v395
    %v397 = vpop.xlane.xlu0 %396
    %v398 = vcvt.f32.s32 %v397
    %v399 = vcvt.f32.s32 %v393
    %v400 = vshll.u32 %v399, 16
    %v401 = vadd.s32 %v400, %v398
    %v402 = vsel %vm52, %v386, 2147483647
    %v403 = vand.u32 %v402, 65535
    %v404 = vshra.s32 %v402, 16
    %v405 = vcvt.s32.f32 %v403
    %v406 = vcvt.s32.f32 %v404
    %407 = vmin.xlane.f32.xlu0 %v406
    %v408 = vpop.xlane.xlu0 %407
    %vm409 = vcmp.eq.f32.partialorder %v406, %v408
    %v410 = vsel %vm409, %v405, inf
    %411 = vmin.xlane.f32.xlu0 %v410
    %v412 = vpop.xlane.xlu0 %411
    %v413 = vcvt.f32.s32 %v412
    %v414 = vcvt.f32.s32 %v408
    %v415 = vshll.u32 %v414, 16
    %v416 = vadd.s32 %v415, %v413
    %vm417 = vcmask 32800
    %418 = vst.msk [vmem:[#allocation6] sm:$0x1] %vm417, %v401
    %419 = vst.msk [vmem:[#allocation6 + $0x1] sm:$0x1] %vm417, %v416
    %vm420 = vcmp.eq.s32.totalorder %v42, %v401
    %vm421 = vcmp.eq.s32.totalorder %v42, %v416
    %v422 = vsel %vm420, 2147483647, %v351
    %v423 = vsel %vm421, 2147483647, %v352
    %424 = vst [vmem:[#allocation2] sm:$0x1] %v422
    %425 = vst [vmem:[#allocation2 + $0x1] sm:$0x1] %v423
    %v426 = vld [vmem:[#allocation2] sm:$0x1]
    %v427 = vld [vmem:[#allocation2 + $0x1] sm:$0x1]
    %v428 = vsel %vm52, %v426, 2147483647
    %v429 = vand.u32 %v428, 65535
    %v430 = vshra.s32 %v428, 16
    %v431 = vcvt.s32.f32 %v429
    %v432 = vcvt.s32.f32 %v430
    %433 = vmin.xlane.f32.xlu0 %v432
    %v434 = vpop.xlane.xlu0 %433
    %vm435 = vcmp.eq.f32.partialorder %v432, %v434
    %v436 = vsel %vm435, %v431, inf
    %437 = vmin.xlane.f32.xlu0 %v436
    %v438 = vpop.xlane.xlu0 %437
    %v439 = vcvt.f32.s32 %v438
    %v440 = vcvt.f32.s32 %v434
    %v441 = vshll.u32 %v440, 16
    %v442 = vadd.s32 %v441, %v439
    %v443 = vsel %vm52, %v427, 2147483647
    %v444 = vand.u32 %v443, 65535
    %v445 = vshra.s32 %v443, 16
    %v446 = vcvt.s32.f32 %v444
    %v447 = vcvt.s32.f32 %v445
    %448 = vmin.xlane.f32.xlu0 %v447
    %v449 = vpop.xlane.xlu0 %448
    %vm450 = vcmp.eq.f32.partialorder %v447, %v449
    %v451 = vsel %vm450, %v446, inf
    %452 = vmin.xlane.f32.xlu0 %v451
    %v453 = vpop.xlane.xlu0 %452
    %v454 = vcvt.f32.s32 %v453
    %v455 = vcvt.f32.s32 %v449
    %v456 = vshll.u32 %v455, 16
    %v457 = vadd.s32 %v456, %v454
    %vm458 = vcmp.eq.s32.totalorder %v426, %v442
    %vm459 = vcmp.eq.s32.totalorder %v427, %v457
    %v460 = vsel %vm458, %v42, 128
    %v461 = vsel %vm459, %v42, 128
    %v462 = vsel %vm52, %v460, 2147483647
    %v463 = vand.u32 %v462, 65535
    %v464 = vshra.s32 %v462, 16
    %v465 = vcvt.s32.f32 %v463
    %v466 = vcvt.s32.f32 %v464
    %467 = vmin.xlane.f32.xlu0 %v466
    %v468 = vpop.xlane.xlu0 %467
    %vm469 = vcmp.eq.f32.partialorder %v466, %v468
    %v470 = vsel %vm469, %v465, inf
    %471 = vmin.xlane.f32.xlu0 %v470
    %v472 = vpop.xlane.xlu0 %471
    %v473 = vcvt.f32.s32 %v472
    %v474 = vcvt.f32.s32 %v468
    %v475 = vshll.u32 %v474, 16
    %v476 = vadd.s32 %v475, %v473
    %v477 = vsel %vm52, %v461, 2147483647
    %v478 = vand.u32 %v477, 65535
    %v479 = vshra.s32 %v477, 16
    %v480 = vcvt.s32.f32 %v478
    %v481 = vcvt.s32.f32 %v479
    %482 = vmin.xlane.f32.xlu0 %v481
    %v483 = vpop.xlane.xlu0 %482
    %vm484 = vcmp.eq.f32.partialorder %v481, %v483
    %v485 = vsel %vm484, %v480, inf
    %486 = vmin.xlane.f32.xlu0 %v485
    %v487 = vpop.xlane.xlu0 %486
    %v488 = vcvt.f32.s32 %v487
    %v489 = vcvt.f32.s32 %v483
    %v490 = vshll.u32 %v489, 16
    %v491 = vadd.s32 %v490, %v488
    %vm492 = vcmask 41000
    %493 = vst.msk [vmem:[#allocation6] sm:$0x1] %vm492, %v476
    %494 = vst.msk [vmem:[#allocation6 + $0x1] sm:$0x1] %vm492, %v491
    %vm495 = vcmp.eq.s32.totalorder %v42, %v476
    %vm496 = vcmp.eq.s32.totalorder %v42, %v491
    %v497 = vsel %vm495, 2147483647, %v426
    %v498 = vsel %vm496, 2147483647, %v427
    %499 = vst [vmem:[#allocation2] sm:$0x1] %v497
    %500 = vst [vmem:[#allocation2 + $0x1] sm:$0x1] %v498
    // Predicated region
    $region10: #{tpu_custom_call.1} parent=1 // pred_check
      _
    $region11: #{tpu_custom_call.1} parent=1 // pred_check_branch
      %502 = sbr.rel (0) target = $region13
    $region12: #{tpu_custom_call.1} parent=1 // pred_region
      %s504 = ssub.s32 32, 32
      %505 = vsyncadd [#allocation5], %s504
      %s506 = sshll.u32 [#allocation6], 4
      %s507 = int_to_ptr.vmem [resolvable:$true] %s506
      %512 = dma.vmem_to_hbm [thread:$0]  %s507, 32, %s1, [#allocation5], 16, 16, 1
    $region13: #{tpu_custom_call.1} parent=1 // pred_fallthru
      _
    // Predicated region
    $region14: #{tpu_custom_call.1} parent=1 // pred_check
      _
    $region15: #{tpu_custom_call.1} parent=1 // pred_check_branch
      %514 = sbr.rel (0) target = $region17
    $region16: #{tpu_custom_call.1} parent=1 // pred_region
      %515 = dma.done [#allocation5], 32
    $region17: #{tpu_custom_call.1} parent=1 // pred_fallthru
      _
    %516 = vsyncpa [#allocation4], 1
    %517 = vsyncpa [#allocation5], 1

</llo_original>
